<compile_context>
chip_gen: v7x
topology: tpu7x:2x2x1
jax: 0.10.0
libtpu: 0.0.40
codegen_flags: <defaults>
</compile_context>

<pallas_src>
import functools
import math

import jax
import jax.numpy as jnp
from jax.experimental import pallas as pl
from jax.experimental.pallas import tpu as pltpu

# Large finite negative instead of -inf: avoids (-inf) - (-inf) => NaN edge
# cases in the online-softmax recurrence.
_MASK_VALUE = -1e30


# --------------------------------------------------------------------------
# Kernel 1: fused QKV projection (f32 matmul, bf16 outputs)
# --------------------------------------------------------------------------
def _qkv_proj_kernel(x_ref, wqkv_ref, q_ref, k_ref, v_ref):
    """x block (bt, C) @ fused weights (C, 3H) -> q, k, v blocks (bt, H) bf16."""
    h = q_ref.shape[-1]
    qkv = jnp.dot(x_ref[...], wqkv_ref[...],
                  preferred_element_type=jnp.float32)       # (bt, 3H) f32
    # H = 64 (single head) forces 64-lane outputs; unavoidable given the
    # module's output shape, and the projection is <1% of total flops.
    q_ref[...] = qkv[:, :h].astype(q_ref.dtype)             # already * 1/sqrt(H)
    k_ref[...] = qkv[:, h:2 * h].astype(k_ref.dtype)
    v_ref[...] = qkv[:, 2 * h:].astype(v_ref.dtype)


# --------------------------------------------------------------------------
# Kernel 2: causal flash attention; kv reduction is an in-kernel loop
# --------------------------------------------------------------------------
def _flash_attn_kernel(q_ref, k_ref, v_ref, o_ref, m_s, l_s, acc_s, *, blk):
    """One (batch, q-tile) per grid step.

    q_ref : (blk, H)  bf16, pre-scaled by 1/sqrt(H)
    k_ref : (T,   H)  bf16, full K for this batch element (VMEM resident)
    v_ref : (T,   H)  bf16, full V for this batch element (VMEM resident)
    o_ref : (blk, H)  output (input dtype)
    m_s / l_s : (blk, 128) f32 lane-dense running max / sum
    acc_s     : (blk, H)   f32 output accumulator
    """
    qi = pl.program_id(1)
    q = q_ref[...]                                   # (blk, H) bf16

    m_s[...] = jnp.full_like(m_s, _MASK_VALUE)
    l_s[...] = jnp.zeros_like(l_s)
    acc_s[...] = jnp.zeros_like(acc_s)

    def process(ki, masked):
        start = pl.multiple_of(ki * blk, blk)
        k = k_ref[pl.ds(start, blk), :]              # (blk, H) bf16
        v = v_ref[pl.ds(start, blk), :]              # (blk, H) bf16

        # Scores: contract on the head axis of both q and k (bf16 MXU, f32 acc).
        s = jax.lax.dot_general(
            q, k, (((1,), (1,)), ((), ())),
            preferred_element_type=jnp.float32)      # (blk, blk) f32

        if masked:
            # Diagonal tile: row/col tile offsets are equal, so the local
            # in-tile indices give the exact causal condition.
            rows = jax.lax.broadcasted_iota(jnp.int32, s.shape, 0)
            cols = jax.lax.broadcasted_iota(jnp.int32, s.shape, 1)
            s = jnp.where(cols <= rows, s, _MASK_VALUE)

        m_prev = m_s[...]                                           # (blk, 128)
        m_next = jnp.maximum(m_prev, jnp.max(s, axis=-1, keepdims=True))
        m_col = m_next[:, :1]                                       # (blk, 1)
        alpha = jnp.exp(m_prev[:, :1] - m_col)                      # (blk, 1)
        p = jnp.exp(s - m_col)                                      # (blk, blk) f32
        l_s[...] = alpha * l_s[...] + jnp.sum(p, axis=-1, keepdims=True)
        acc_s[...] = alpha * acc_s[...] + jnp.dot(
            p.astype(v.dtype), v, preferred_element_type=jnp.float32)
        m_s[...] = m_next

    # Fully-visible kv tiles (no mask work): ki in [0, qi).
    @pl.loop(0, qi)
    def _full(ki):
        process(ki, masked=False)

    # Diagonal tile (the only one that needs the causal mask).
    process(qi, masked=True)

    o_ref[...] = (acc_s[...] *
                  pl.reciprocal(l_s[:, :1], approx=True)).astype(o_ref.dtype)


# --------------------------------------------------------------------------
# Wrapper
# --------------------------------------------------------------------------
def _pick_block(total: int, target: int) -> int:
    """Largest tile <= target dividing `total`; prefer multiples of 128, then 8."""
    if total <= target:
        return total
    for align in (128, 8):
        for blk in range(min(target, total), align - 1, -1):
            if blk % align == 0 and total % blk == 0:
                return blk
    # TODO(synk): ragged tails (no multiple-of-8 divisor) need in-kernel
    # masking; fall back to a single full-length tile for now.
    return total


def self_attention(x, wq, wk, wv, *, block_q=512, block_proj=512):
    """x: (B, T, C); wq/wk/wv: (C, H)  ->  (B, T, H).

    block_q:    query-tile length of the attention kernel (512 default).
    block_proj: seq-tile length of the fused QKV-projection kernel.
    """
    B, T, C = x.shape
    H = wq.shape[1]
    scale = 1.0 / math.sqrt(H)   # SDPA default scale (flash path of the module)

    # Fold the softmax scale into Wq and fuse the three projection weights so
    # the projection kernel runs a single MXU pass of output width 3H.
    wqkv = jnp.concatenate([wq * scale, wk, wv], axis=1)        # (C, 3H) f32

    # ---- Kernel 1: fused QKV projection (bf16 outputs) ---------------------
    bt = _pick_block(T, block_proj)
    q, k, v = pl.pallas_call(
        _qkv_proj_kernel,
        out_shape=(jax.ShapeDtypeStruct((B, T, H), jnp.bfloat16),) * 3,
        grid_spec=pltpu.PrefetchScalarGridSpec(
            num_scalar_prefetch=0,
            grid=(B, T // bt),
            in_specs=[
                pl.BlockSpec((None, bt, C), lambda b, t: (b, t, 0)),
                pl.BlockSpec((C, 3 * H), lambda b, t: (0, 0)),
            ],
            out_specs=(
                pl.BlockSpec((None, bt, H), lambda b, t: (b, t, 0)),
                pl.BlockSpec((None, bt, H), lambda b, t: (b, t, 0)),
                pl.BlockSpec((None, bt, H), lambda b, t: (b, t, 0)),
            ),
        ),
        compiler_params=pltpu.CompilerParams(
            dimension_semantics=("parallel", "parallel")),
    )(x, wqkv)

    # ---- Kernel 2: causal flash attention ----------------------------------
    blk = _pick_block(T, block_q)
    nt = T // blk

    kernel = functools.partial(_flash_attn_kernel, blk=blk)

    return pl.pallas_call(
        kernel,
        out_shape=jax.ShapeDtypeStruct((B, T, H), x.dtype),
        grid_spec=pltpu.PrefetchScalarGridSpec(
            num_scalar_prefetch=0,
            grid=(B, nt),
            in_specs=[
                pl.BlockSpec((None, blk, H), lambda b, qi: (b, qi, 0)),  # q tile
                pl.BlockSpec((None, T, H), lambda b, qi: (b, 0, 0)),     # full K
                pl.BlockSpec((None, T, H), lambda b, qi: (b, 0, 0)),     # full V
            ],
            out_specs=pl.BlockSpec((None, blk, H), lambda b, qi: (b, qi, 0)),
            scratch_shapes=[
                pltpu.VMEM((blk, 128), jnp.float32),   # running max (lane-dense)
                pltpu.VMEM((blk, 128), jnp.float32),   # running sum (lane-dense)
                pltpu.VMEM((blk, H), jnp.float32),     # output accumulator
            ],
        ),
        # Both axes independent -> even megacore split on v7x (B * nt steps).
        compiler_params=pltpu.CompilerParams(
            dimension_semantics=("parallel", "parallel")),
    )(q, k, v)


# --------------------------------------------------------------------------
# Pure-JAX reference (for verification)
# --------------------------------------------------------------------------
def self_attention_ref(x, wq, wk, wv):
    hp = jax.lax.Precision.HIGHEST
    q = jnp.einsum("btc,ch->bth", x, wq, precision=hp)
    k = jnp.einsum("btc,ch->bth", x, wk, precision=hp)
    v = jnp.einsum("btc,ch->bth", x, wv, precision=hp)
    scale = 1.0 / math.sqrt(q.shape[-1])
    s = jnp.einsum("bqh,bkh->bqk", q, k, precision=hp) * scale
    T = x.shape[1]
    mask = jnp.tril(jnp.ones((T, T), dtype=bool))
    s = jnp.where(mask[None], s, -jnp.inf)
    p = jax.nn.softmax(s, axis=-1)
    return jnp.einsum("bqk,bkh->bqh", p, v, precision=hp)


if __name__ == "__main__":
    # Small config consistent with the module defaults:
    # C = n_embeds = 384, n_heads = 6  ->  head_size = 64.
    B, T = 2, 256
    n_embeds, n_heads = 384, 6
    head_size = n_embeds // n_heads

    key = jax.random.PRNGKey(0)
    kx, kq, kk, kv_key = jax.random.split(key, 4)

    x = jax.random.normal(kx, (B, T, n_embeds), dtype=jnp.float32)

    # Deterministic Linear(n_embeds, head_size, bias=False) weights,
    # uniform(-1/sqrt(in), 1/sqrt(in)) like PyTorch's default init.
    bound = 1.0 / math.sqrt(n_embeds)
    wq = jax.random.uniform(kq, (n_embeds, head_size), jnp.float32, -bound, bound)
    wk = jax.random.uniform(kk, (n_embeds, head_size), jnp.float32, -bound, bound)
    wv = jax.random.uniform(kv_key, (n_embeds, head_size), jnp.float32, -bound, bound)

    # Small q tile so the test exercises both the fully-visible kv loop
    # (up to 3 iterations) and the masked diagonal tile.
    out = self_attention(x, wq, wk, wv, block_q=64, block_proj=128)
    out = jax.block_until_ready(out)

    ref = self_attention_ref(x, wq, wk, wv)
    assert out.shape == (B, T, head_size)
    max_err = float(jnp.max(jnp.abs(out - ref)))
    # bf16 q/k/v operands -> ~1e-2 absolute tolerance vs the f32 reference.
    assert jnp.allclose(out, ref, atol=2e-2, rtol=2e-2), (
        f"mismatch vs reference (max abs err = {max_err})")

    print("KERNEL_OK")
</pallas_src>

<mosaic_0001>
module attributes {stable_mosaic.version = 11 : i64} {
  func.func @_qkv_proj_kernel(%arg0: i32, %arg1: i32, %arg2: memref<1x128x384xf32, #tpu.memory_space<vmem>>, %arg3: memref<384x192xf32, #tpu.memory_space<vmem>>, %arg4: memref<1x128x64xbf16, #tpu.memory_space<vmem>>, %arg5: memref<1x128x64xbf16, #tpu.memory_space<vmem>>, %arg6: memref<1x128x64xbf16, #tpu.memory_space<vmem>>) attributes {dimension_semantics = [#tpu.dimension_semantics<parallel>, #tpu.dimension_semantics<parallel>], iteration_bounds = array<i64: 2, 2>, scalar_prefetch = 0 : i64, scratch_operands = 0 : i64, tpu.core_type = #tpu.core_type<tc>, window_params = [{transform_indices = @transform_0, window_bounds = array<i64: 1, 128, 384>}, {pipeline_mode = #tpu.pipeline_mode<synchronous>, transform_indices = @transform_1, window_bounds = array<i64: 384, 192>}, {transform_indices = @transform_2, window_bounds = array<i64: 1, 128, 64>}, {transform_indices = @transform_3, window_bounds = array<i64: 1, 128, 64>}, {transform_indices = @transform_4, window_bounds = array<i64: 1, 128, 64>}]} {
    %c0 = arith.constant 0 : index
    %c0_0 = arith.constant 0 : index
    %c0_1 = arith.constant 0 : index
    %0 = vector.load %arg2[%c0, %c0_0, %c0_1] : memref<1x128x384xf32, #tpu.memory_space<vmem>>, vector<1x128x384xf32>
    %1 = vector.shape_cast %0 : vector<1x128x384xf32> to vector<128x384xf32>
    %c0_2 = arith.constant 0 : index
    %c0_3 = arith.constant 0 : index
    %2 = vector.load %arg3[%c0_2, %c0_3] : memref<384x192xf32, #tpu.memory_space<vmem>>, vector<384x192xf32>
    %cst = arith.constant dense<0.000000e+00> : vector<128x192xf32>
    %3 = tpu.matmul %1, %2, %cst {dimension_numbers = #tpu.dot_dimension_numbers<[1], [0], [0], [1], [0, 0, 1, 1], [], []>} : vector<128x384xf32>, vector<384x192xf32>, vector<128x192xf32> -> vector<128x192xf32>
    %4 = vector.extract_strided_slice %3 {offsets = [0, 0], sizes = [128, 64], strides = [1, 1]} : vector<128x192xf32> to vector<128x64xf32>
    %5 = arith.truncf %4 : vector<128x64xf32> to vector<128x64xbf16>
    %c0_4 = arith.constant 0 : index
    %c0_5 = arith.constant 0 : index
    %c0_6 = arith.constant 0 : index
    %6 = vector.load %arg4[%c0_4, %c0_5, %c0_6] : memref<1x128x64xbf16, #tpu.memory_space<vmem>>, vector<1x128x64xbf16>
    %7 = vector.shape_cast %6 : vector<1x128x64xbf16> to vector<128x64xbf16>
    %8 = vector.shape_cast %5 : vector<128x64xbf16> to vector<1x128x64xbf16>
    tpu.vector_store %arg4[%c0_4, %c0_5, %c0_6], %8 {strides = array<i32>} : memref<1x128x64xbf16, #tpu.memory_space<vmem>>, vector<1x128x64xbf16>,
    %9 = vector.extract_strided_slice %3 {offsets = [0, 64], sizes = [128, 64], strides = [1, 1]} : vector<128x192xf32> to vector<128x64xf32>
    %10 = arith.truncf %9 : vector<128x64xf32> to vector<128x64xbf16>
    %c0_7 = arith.constant 0 : index
    %c0_8 = arith.constant 0 : index
    %c0_9 = arith.constant 0 : index
    %11 = vector.load %arg5[%c0_7, %c0_8, %c0_9] : memref<1x128x64xbf16, #tpu.memory_space<vmem>>, vector<1x128x64xbf16>
    %12 = vector.shape_cast %11 : vector<1x128x64xbf16> to vector<128x64xbf16>
    %13 = vector.shape_cast %10 : vector<128x64xbf16> to vector<1x128x64xbf16>
    tpu.vector_store %arg5[%c0_7, %c0_8, %c0_9], %13 {strides = array<i32>} : memref<1x128x64xbf16, #tpu.memory_space<vmem>>, vector<1x128x64xbf16>,
    %14 = vector.extract_strided_slice %3 {offsets = [0, 128], sizes = [128, 64], strides = [1, 1]} : vector<128x192xf32> to vector<128x64xf32>
    %15 = arith.truncf %14 : vector<128x64xf32> to vector<128x64xbf16>
    %c0_10 = arith.constant 0 : index
    %c0_11 = arith.constant 0 : index
    %c0_12 = arith.constant 0 : index
    %16 = vector.load %arg6[%c0_10, %c0_11, %c0_12] : memref<1x128x64xbf16, #tpu.memory_space<vmem>>, vector<1x128x64xbf16>
    %17 = vector.shape_cast %16 : vector<1x128x64xbf16> to vector<128x64xbf16>
    %18 = vector.shape_cast %15 : vector<128x64xbf16> to vector<1x128x64xbf16>
    tpu.vector_store %arg6[%c0_10, %c0_11, %c0_12], %18 {strides = array<i32>} : memref<1x128x64xbf16, #tpu.memory_space<vmem>>, vector<1x128x64xbf16>,
    return
  }
  func.func @transform_0(%arg0: i32, %arg1: i32) -> (i32, i32, i32) {
    %c0_i32 = arith.constant 0 : i32
    %c0_i32_0 = arith.constant 0 : i32
    return %arg0, %arg1, %c0_i32 : i32, i32, i32
  }
  func.func @transform_1(%arg0: i32, %arg1: i32) -> (i32, i32) {
    %c0_i32 = arith.constant 0 : i32
    %c0_i32_0 = arith.constant 0 : i32
    %c0_i32_1 = arith.constant 0 : i32
    return %c0_i32, %c0_i32_0 : i32, i32
  }
  func.func @transform_2(%arg0: i32, %arg1: i32) -> (i32, i32, i32) {
    %c0_i32 = arith.constant 0 : i32
    %c0_i32_0 = arith.constant 0 : i32
    return %arg0, %arg1, %c0_i32 : i32, i32, i32
  }
  func.func @transform_3(%arg0: i32, %arg1: i32) -> (i32, i32, i32) {
    %c0_i32 = arith.constant 0 : i32
    %c0_i32_0 = arith.constant 0 : i32
    return %arg0, %arg1, %c0_i32 : i32, i32, i32
  }
  func.func @transform_4(%arg0: i32, %arg1: i32) -> (i32, i32, i32) {
    %c0_i32 = arith.constant 0 : i32
    %c0_i32_0 = arith.constant 0 : i32
    return %arg0, %arg1, %c0_i32 : i32, i32, i32
  }
}

</mosaic_0001>

<llo_original>
// kernel: tpu_custom_call.1
$region0: #{tpu_custom_call.1}
  #allocation0 [shape = 'u32[]', space=smem, size = 0x4, offset = 0x4, fixed_abs, tag = 'smem constant byte address 0x4 - core index']
  #allocation1 [shape = 'u32[144,128]{1,0:T(1,128)}', space=vmem, size = 0x12000, scoped, tag = 'internal scratch']
  %s0 = inlined_call_operand.hbm [shape: f32[2,256,384], index: 0, kind: input, shape index: {}]
  %s1 = inlined_call_operand.vmem [shape: f32[384,192], index: 1, kind: input, shape index: {}]
  %s2 = inlined_call_operand.vmem [shape: bf16[2,256,64], index: 2, kind: output, shape index: {0}]
  %s3 = inlined_call_operand.vmem [shape: bf16[2,256,64], index: 3, kind: output, shape index: {1}]
  %s4 = inlined_call_operand.vmem [shape: bf16[2,256,64], index: 4, kind: output, shape index: {2}]
  %5 = xla_tuple %s2, %s3, %s4
  %s6 = sld [smem:[#allocation0]]
  $region61: #{tpu_custom_call.1} parent=0
    _
  %s8 = ssub.s32 1, %s6
  %s9 = scalar_select 0, %s8, %s6
  $region1: #{tpu_custom_call.1} parent=0
    #allocation2 [shape = 'u8[393216]{0}', space=vmem, size = 0x60000, scoped, tag = 'input window, operand 0']
    #allocation3 [shape = 's32[2]{0}', space=sflag, size = 0x8, scoped, tag = 'scoped memory for tpu_custom_call.1']
    %10 = vsyncpa [#allocation3], 0
    %s11 = scalar_lea.sflag [#allocation3], 1
    %12 = vsyncpa %s11, 0
    loop: start=0, step=1, limit=6
    $region2: #{tpu_custom_call.1} parent=1 // loop_pre_header
      _
    $region3: #{tpu_custom_call.1} parent=1 // loop_header
      %s14 = sphi 0, %s18
      %p15 = scmp.ge.s32.totalorder %s14, 6
      %s21 = sphi 0, %s33
      %s22 = sphi 0, %s29
      %s23 = sphi 0, %s21
      %s24 = sphi 0, %s22
      %s25 = sphi 0, %s23
      %s26 = sphi 0, %s24
      %s38 = sphi 0, %s40
      %s41 = sphi 0, %s38
      %s42 = sphi 0, %s41
      %s58 = sphi 0, %s42
      %s62 = sphi 0, %s62
      %s64 = sphi 0, %s62
      %s65 = sphi 0, %s64
      %s79 = sphi 0, %s65
      %s87 = sphi 0, %s89
      %s90 = sphi 0, %s87
      %s91 = sphi 0, %s90
      %s107 = sphi 0, %s91
      %s115 = sphi 0, %s117
      %s118 = sphi 0, %s115
      %s119 = sphi 0, %s118
      %s135 = sphi 0, %s119
      %s143 = sphi 0, %s145
      %s146 = sphi 0, %s143
      %s147 = sphi 0, %s146
      %s163 = sphi 0, %s147
    $region4: #{tpu_custom_call.1} parent=1 // loop_header_branch
      %17 = sbr.rel (%p15) target = $region8
    $region5: #{tpu_custom_call.1} parent=1 // loop_body
      %s19 = ssub.s32 %s14, 1
      %s20 = ssub.s32 %s14, 2
      %s27 = sadd.s32 1, %s22
      %p28 = scmp.ge.s32.totalorder %s27, 2
      %s29 = scalar_select %p28, 0, %s27
      %s30 = sadd.s32 1, %s21
      %s31 = scalar_select %p28, %s30, %s21
      %p32 = scmp.ge.s32.totalorder %s31, 2
      %s33 = scalar_select %p32, 0, %s31
      %s34 = ssub.s32 %s21, %s33
      %s35 = ssub.s32 %s22, %s29
      %s36 = sor.u32 %s34, %s35
      %p37 = scmp.eq.s32.totalorder %s36, 0
      %s39 = sadd.s32 %s38, 1
      %s40 = scalar_select %p37, %s38, %s39
      %p43 = pneg %p37
      %p44 = scmp.eq.s32.totalorder %s14, 3
      %p45 = por %p43, %p44
      %p46 = scmp.ne.s32.totalorder %s38, %s41
      %p47 = scmp.eq.s32.totalorder %s14, 0
      %p48 = por %p46, %p47
      %p49 = scmp.ne.s32.totalorder %s38, %s41
      %p50 = scmp.eq.s32.totalorder %s19, 3
      %p51 = por %p49, %p50
      %p52 = scmp.ne.s32.totalorder %s41, %s42
      %p53 = scmp.eq.s32.totalorder %s19, 0
      %p54 = por %p52, %p53
      %p55 = scmp.ne.s32.totalorder %s41, %s42
      %p56 = scmp.eq.s32.totalorder %s20, 3
      %p57 = por %p55, %p56
      %p59 = scmp.ne.s32.totalorder %s42, %s58
      %p60 = scmp.eq.s32.totalorder %s20, 0
      %p61 = por %p59, %p60
      %s63 = sadd.s32 %s62, 1
      %p66 = scmp.eq.s32.totalorder %s14, 3
      %p67 = scmp.ne.s32.totalorder %s62, %s64
      %p68 = scmp.eq.s32.totalorder %s14, 0
      %p69 = por %p67, %p68
      %p70 = scmp.ne.s32.totalorder %s62, %s64
      %p71 = scmp.eq.s32.totalorder %s19, 3
      %p72 = por %p70, %p71
      %p73 = scmp.ne.s32.totalorder %s64, %s65
      %p74 = scmp.eq.s32.totalorder %s19, 0
      %p75 = por %p73, %p74
      %p76 = scmp.ne.s32.totalorder %s64, %s65
      %p77 = scmp.eq.s32.totalorder %s20, 3
      %p78 = por %p76, %p77
      %p80 = scmp.ne.s32.totalorder %s65, %s79
      %p81 = scmp.eq.s32.totalorder %s20, 0
      %p82 = por %p80, %p81
      %s83 = ssub.s32 %s21, %s33
      %s84 = ssub.s32 %s22, %s29
      %s85 = sor.u32 %s83, %s84
      %p86 = scmp.eq.s32.totalorder %s85, 0
      %s88 = sadd.s32 %s87, 1
      %s89 = scalar_select %p86, %s87, %s88
      %p92 = pneg %p86
      %p93 = scmp.eq.s32.totalorder %s14, 3
      %p94 = por %p92, %p93
      %p95 = scmp.ne.s32.totalorder %s87, %s90
      %p96 = scmp.eq.s32.totalorder %s14, 0
      %p97 = por %p95, %p96
      %p98 = scmp.ne.s32.totalorder %s87, %s90
      %p99 = scmp.eq.s32.totalorder %s19, 3
      %p100 = por %p98, %p99
      %p101 = scmp.ne.s32.totalorder %s90, %s91
      %p102 = scmp.eq.s32.totalorder %s19, 0
      %p103 = por %p101, %p102
      %p104 = scmp.ne.s32.totalorder %s90, %s91
      %p105 = scmp.eq.s32.totalorder %s20, 3
      %p106 = por %p104, %p105
      %p108 = scmp.ne.s32.totalorder %s91, %s107
      %p109 = scmp.eq.s32.totalorder %s20, 0
      %p110 = por %p108, %p109
      %s111 = ssub.s32 %s21, %s33
      %s112 = ssub.s32 %s22, %s29
      %s113 = sor.u32 %s111, %s112
      %p114 = scmp.eq.s32.totalorder %s113, 0
      %s116 = sadd.s32 %s115, 1
      %s117 = scalar_select %p114, %s115, %s116
      %p120 = pneg %p114
      %p121 = scmp.eq.s32.totalorder %s14, 3
      %p122 = por %p120, %p121
      %p123 = scmp.ne.s32.totalorder %s115, %s118
      %p124 = scmp.eq.s32.totalorder %s14, 0
      %p125 = por %p123, %p124
      %p126 = scmp.ne.s32.totalorder %s115, %s118
      %p127 = scmp.eq.s32.totalorder %s19, 3
      %p128 = por %p126, %p127
      %p129 = scmp.ne.s32.totalorder %s118, %s119
      %p130 = scmp.eq.s32.totalorder %s19, 0
      %p131 = por %p129, %p130
      %p132 = scmp.ne.s32.totalorder %s118, %s119
      %p133 = scmp.eq.s32.totalorder %s20, 3
      %p134 = por %p132, %p133
      %p136 = scmp.ne.s32.totalorder %s119, %s135
      %p137 = scmp.eq.s32.totalorder %s20, 0
      %p138 = por %p136, %p137
      %s139 = ssub.s32 %s21, %s33
      %s140 = ssub.s32 %s22, %s29
      %s141 = sor.u32 %s139, %s140
      %p142 = scmp.eq.s32.totalorder %s141, 0
      %s144 = sadd.s32 %s143, 1
      %s145 = scalar_select %p142, %s143, %s144
      %p148 = pneg %p142
      %p149 = scmp.eq.s32.totalorder %s14, 3
      %p150 = por %p148, %p149
      %p151 = scmp.ne.s32.totalorder %s143, %s146
      %p152 = scmp.eq.s32.totalorder %s14, 0
      %p153 = por %p151, %p152
      %p154 = scmp.ne.s32.totalorder %s143, %s146
      %p155 = scmp.eq.s32.totalorder %s19, 3
      %p156 = por %p154, %p155
      %p157 = scmp.ne.s32.totalorder %s146, %s147
      %p158 = scmp.eq.s32.totalorder %s19, 0
      %p159 = por %p157, %p158
      %p160 = scmp.ne.s32.totalorder %s146, %s147
      %p161 = scmp.eq.s32.totalorder %s20, 3
      %p162 = por %p160, %p161
      %p164 = scmp.ne.s32.totalorder %s147, %s163
      %p165 = scmp.eq.s32.totalorder %s20, 0
      %p166 = por %p164, %p165
      %p167 = scmp.le.s32.totalorder 1, %s14
      %p168 = scmp.lt.s32.totalorder %s14, 5
      %p169 = pnand %p167, %p168
      %p170 = pneg %p169
      // Predicated region
      $region9: #{tpu_custom_call.1} parent=5 // pred_check
        _
      $region10: #{tpu_custom_call.1} parent=5 // pred_check_branch
        %172 = sbr.rel (%p169) target = $region12
      $region11: #{tpu_custom_call.1} parent=5 // pred_region
        %s173 = ssub.s32 %s14, 1
        // Predicated region
        $region13: #{tpu_custom_call.1} parent=11 // pred_check
          %p174 = pneg %p75
        $region14: #{tpu_custom_call.1} parent=11 // pred_check_branch
          %176 = sbr.rel (%p174) target = $region16
        $region15: #{tpu_custom_call.1} parent=11 // pred_region
          _
        $region16: #{tpu_custom_call.1} parent=11 // pred_fallthru
          _
      $region12: #{tpu_custom_call.1} parent=5 // pred_fallthru
        _
      %p177 = scmp.lt.s32.totalorder %s14, 4
      // Predicated region
      $region17: #{tpu_custom_call.1} parent=5 // pred_check
        %p178 = pneg %p177
      $region18: #{tpu_custom_call.1} parent=5 // pred_check_branch
        %180 = sbr.rel (%p178) target = $region20
      $region19: #{tpu_custom_call.1} parent=5 // pred_region
        // Predicated region
        $region21: #{tpu_custom_call.1} parent=19 // pred_check
          %p181 = pneg %p48
        $region22: #{tpu_custom_call.1} parent=19 // pred_check_branch
          %183 = sbr.rel (%p181) target = $region24
        $region23: #{tpu_custom_call.1} parent=19 // pred_region
          %s184 = sand.u32 %s38, 1
          %s185 = scalar_lea.sflag [#allocation3], %s184
          %s186 = sand.u32 %s38, 1
          %s187 = smul.addr %s186, 384
          %s188 = scalar_lea.vmem [#allocation2], %s187
          %s189 = smul.u32 16, %s22
          %s191 = ssub.s32 6144, 6144
          %192 = vsyncadd %s185, %s191
          %s193 = smul.addr %s189, 3
          %s194 = smul.addr %s21, 96
          %s195 = sadd.s32 %s193, %s194
          %s196 = smul.addr %s195, 128
          %s197 = scalar_lea.hbm %s0, %s196
          %s198 = sshll.u32 %s188, 4
          %s199 = int_to_ptr.vmem [resolvable:$true] %s198
          %204 = dma.hbm_to_vmem [thread:$0]  %s197, 6144, %s199, %s185, 384, 384, 24
        $region24: #{tpu_custom_call.1} parent=19 // pred_fallthru
          _
      $region20: #{tpu_custom_call.1} parent=5 // pred_fallthru
        _
      %p205 = scmp.le.s32.totalorder 1, %s14
      %p206 = scmp.lt.s32.totalorder %s14, 5
      %p207 = pnand %p205, %p206
      %p208 = pneg %p207
      // Predicated region
      $region25: #{tpu_custom_call.1} parent=5 // pred_check
        _
      $region26: #{tpu_custom_call.1} parent=5 // pred_check_branch
        %210 = sbr.rel (%p207) target = $region28
      $region27: #{tpu_custom_call.1} parent=5 // pred_region
        %s211 = ssub.s32 %s14, 1
        %s212 = sand.u32 %s41, 1
        %s213 = scalar_lea.sflag [#allocation3], %s212
        %s214 = sand.u32 %s41, 1
        %s215 = smul.addr %s214, 384
        %s216 = scalar_lea.vmem [#allocation2], %s215
        // Predicated region
        $region29: #{tpu_custom_call.1} parent=27 // pred_check
          %p217 = pneg %p54
        $region30: #{tpu_custom_call.1} parent=27 // pred_check_branch
          %219 = sbr.rel (%p217) target = $region32
        $region31: #{tpu_custom_call.1} parent=27 // pred_region
          %220 = dma.done %s213, 6144
        $region32: #{tpu_custom_call.1} parent=27 // pred_fallthru
          _
        %s221 = sand.u32 %s41, 1
        %s222 = scalar_lea.sflag [#allocation3], %s221
        %s223 = sand.u32 %s41, 1
        %s224 = smul.addr %s223, 384
        %s225 = scalar_lea.vmem [#allocation2], %s224
        %p226 = pneg %p54
        %p227 = pneg %p51
        %p228 = pneg %p75
        %p229 = pneg %p72
        %p230 = pneg %p103
        %p231 = pneg %p100
        %s232 = smul.u32 16, %s24
        %p233 = scmp.lt.s32.totalorder %s23, 1
        %s234 = scalar_select %p233, %s23, 1
        %p235 = scmp.lt.s32.totalorder %s232, 31
        %s236 = scalar_select %p235, %s232, 31
        %s237 = smul.addr %s234, 32
        %s238 = sadd.s32 %s236, %s237
        %s239 = smul.addr %s238, 4
        %s240 = scalar_lea.vmem %s2, %s239
        %p241 = pneg %p131
        %p242 = pneg %p128
        %s243 = smul.u32 16, %s24
        %p244 = scmp.lt.s32.totalorder %s23, 1
        %s245 = scalar_select %p244, %s23, 1
        %p246 = scmp.lt.s32.totalorder %s243, 31
        %s247 = scalar_select %p246, %s243, 31
        %s248 = smul.addr %s245, 32
        %s249 = sadd.s32 %s247, %s248
        %s250 = smul.addr %s249, 4
        %s251 = scalar_lea.vmem %s3, %s250
        %p252 = pneg %p159
        %p253 = pneg %p156
        %s254 = smul.u32 16, %s24
        %p255 = scmp.lt.s32.totalorder %s23, 1
        %s256 = scalar_select %p255, %s23, 1
        %p257 = scmp.lt.s32.totalorder %s254, 31
        %s258 = scalar_select %p257, %s254, 31
        %s259 = smul.addr %s256, 32
        %s260 = sadd.s32 %s258, %s259
        %s261 = smul.addr %s260, 4
        %s262 = scalar_lea.vmem %s4, %s261
        %s263 = smul.u32 16, %s24
        %s264 = smul.u32 16, %s24
        %p265 = scmp.lt.s32.totalorder %s23, 1
        %s266 = scalar_select %p265, %s23, 1
        %p267 = scmp.lt.s32.totalorder %s264, 31
        %s268 = scalar_select %p267, %s264, 31
        %s269 = smul.addr %s266, 32
        %s270 = sadd.s32 %s268, %s269
        %s271 = smul.addr %s270, 4
        %s272 = scalar_lea.vmem %s2, %s271
        %s273 = smul.u32 16, %s24
        %s274 = smul.u32 16, %s24
        %p275 = scmp.lt.s32.totalorder %s23, 1
        %s276 = scalar_select %p275, %s23, 1
        %p277 = scmp.lt.s32.totalorder %s274, 31
        %s278 = scalar_select %p277, %s274, 31
        %s279 = smul.addr %s276, 32
        %s280 = sadd.s32 %s278, %s279
        %s281 = smul.addr %s280, 4
        %s282 = scalar_lea.vmem %s3, %s281
        %s283 = smul.u32 16, %s24
        %s284 = smul.u32 16, %s24
        %p285 = scmp.lt.s32.totalorder %s23, 1
        %s286 = scalar_select %p285, %s23, 1
        %p287 = scmp.lt.s32.totalorder %s284, 31
        %s288 = scalar_select %p287, %s284, 31
        %s289 = smul.addr %s286, 32
        %s290 = sadd.s32 %s288, %s289
        %s291 = smul.addr %s290, 4
        %s292 = scalar_lea.vmem %s4, %s291
        %s293 = smul.u32 16, %s24
        %v294 = vld [vmem:[%s216] sm:$0xff]
        %v295 = vld [vmem:[%s216 + $0x8] sm:$0xff]
        %v296 = vld [vmem:[%s216 + $0x10] sm:$0xff]
        %v297 = vld [vmem:[%s216 + $0x18] sm:$0xff]
        %v298 = vld [vmem:[%s216 + $0x20] sm:$0xff]
        %v299 = vld [vmem:[%s216 + $0x28] sm:$0xff]
        %v300 = vld [vmem:[%s216 + $0x30] sm:$0xff]
        %v301 = vld [vmem:[%s216 + $0x38] sm:$0xff]
        %v302 = vld [vmem:[%s216 + $0x40] sm:$0xff]
        %v303 = vld [vmem:[%s216 + $0x48] sm:$0xff]
        %v304 = vld [vmem:[%s216 + $0x50] sm:$0xff]
        %v305 = vld [vmem:[%s216 + $0x58] sm:$0xff]
        %v306 = vld [vmem:[%s216 + $0x60] sm:$0xff]
        %v307 = vld [vmem:[%s216 + $0x68] sm:$0xff]
        %v308 = vld [vmem:[%s216 + $0x70] sm:$0xff]
        %v309 = vld [vmem:[%s216 + $0x78] sm:$0xff]
        %v310 = vld [vmem:[%s216 + $0x80] sm:$0xff]
        %v311 = vld [vmem:[%s216 + $0x88] sm:$0xff]
        %v312 = vld [vmem:[%s216 + $0x90] sm:$0xff]
        %v313 = vld [vmem:[%s216 + $0x98] sm:$0xff]
        %v314 = vld [vmem:[%s216 + $0xa0] sm:$0xff]
        %v315 = vld [vmem:[%s216 + $0xa8] sm:$0xff]
        %v316 = vld [vmem:[%s216 + $0xb0] sm:$0xff]
        %v317 = vld [vmem:[%s216 + $0xb8] sm:$0xff]
        %v318 = vld [vmem:[%s216 + $0xc0] sm:$0xff]
        %v319 = vld [vmem:[%s216 + $0xc8] sm:$0xff]
        %v320 = vld [vmem:[%s216 + $0xd0] sm:$0xff]
        %v321 = vld [vmem:[%s216 + $0xd8] sm:$0xff]
        %v322 = vld [vmem:[%s216 + $0xe0] sm:$0xff]
        %v323 = vld [vmem:[%s216 + $0xe8] sm:$0xff]
        %v324 = vld [vmem:[%s216 + $0xf0] sm:$0xff]
        %v325 = vld [vmem:[%s216 + $0xf8] sm:$0xff]
        %v326 = vld [vmem:[%s216 + $0x100] sm:$0xff]
        %v327 = vld [vmem:[%s216 + $0x108] sm:$0xff]
        %v328 = vld [vmem:[%s216 + $0x110] sm:$0xff]
        %v329 = vld [vmem:[%s216 + $0x118] sm:$0xff]
        %v330 = vld [vmem:[%s216 + $0x120] sm:$0xff]
        %v331 = vld [vmem:[%s216 + $0x128] sm:$0xff]
        %v332 = vld [vmem:[%s216 + $0x130] sm:$0xff]
        %v333 = vld [vmem:[%s216 + $0x138] sm:$0xff]
        %v334 = vld [vmem:[%s216 + $0x140] sm:$0xff]
        %v335 = vld [vmem:[%s216 + $0x148] sm:$0xff]
        %v336 = vld [vmem:[%s216 + $0x150] sm:$0xff]
        %v337 = vld [vmem:[%s216 + $0x158] sm:$0xff]
        %v338 = vld [vmem:[%s216 + $0x160] sm:$0xff]
        %v339 = vld [vmem:[%s216 + $0x168] sm:$0xff]
        %v340 = vld [vmem:[%s216 + $0x170] sm:$0xff]
        %v341 = vld [vmem:[%s216 + $0x178] sm:$0xff]
        %v342 = vld [vmem:[%s1] sm:$0xff]
        %v343 = vld [vmem:[%s1 + $0x8] sm:$0xff]
        %v344 = vld [vmem:[%s1 + $0x10] sm:$0xff]
        %v345 = vld [vmem:[%s1 + $0x18] sm:$0xff]
        %v346 = vld [vmem:[%s1 + $0x20] sm:$0xff]
        %v347 = vld [vmem:[%s1 + $0x28] sm:$0xff]
        %v348 = vld [vmem:[%s1 + $0x30] sm:$0xff]
        %v349 = vld [vmem:[%s1 + $0x38] sm:$0xff]
        %v350 = vld [vmem:[%s1 + $0x40] sm:$0xff]
        %v351 = vld [vmem:[%s1 + $0x48] sm:$0xff]
        %v352 = vld [vmem:[%s1 + $0x50] sm:$0xff]
        %v353 = vld [vmem:[%s1 + $0x58] sm:$0xff]
        %v354 = vld [vmem:[%s1 + $0x60] sm:$0xff]
        %v355 = vld [vmem:[%s1 + $0x68] sm:$0xff]
        %v356 = vld [vmem:[%s1 + $0x70] sm:$0xff]
        %v357 = vld [vmem:[%s1 + $0x78] sm:$0xff]
        %v358 = vld [vmem:[%s1 + $0x80] sm:$0xff]
        %v359 = vld [vmem:[%s1 + $0x88] sm:$0xff]
        %v360 = vld [vmem:[%s1 + $0x90] sm:$0xff]
        %v361 = vld [vmem:[%s1 + $0x98] sm:$0xff]
        %v362 = vld [vmem:[%s1 + $0xa0] sm:$0xff]
        %v363 = vld [vmem:[%s1 + $0xa8] sm:$0xff]
        %v364 = vld [vmem:[%s1 + $0xb0] sm:$0xff]
        %v365 = vld [vmem:[%s1 + $0xb8] sm:$0xff]
        %v366 = vld [vmem:[%s1 + $0xc0] sm:$0xff]
        %v367 = vld [vmem:[%s1 + $0xc8] sm:$0xff]
        %v368 = vld [vmem:[%s1 + $0xd0] sm:$0xff]
        %v369 = vld [vmem:[%s1 + $0xd8] sm:$0xff]
        %v370 = vld [vmem:[%s1 + $0xe0] sm:$0xff]
        %v371 = vld [vmem:[%s1 + $0xe8] sm:$0xff]
        %v372 = vld [vmem:[%s1 + $0xf0] sm:$0xff]
        %v373 = vld [vmem:[%s1 + $0xf8] sm:$0xff]
        %v374 = vld [vmem:[%s1 + $0x100] sm:$0xff]
        %v375 = vld [vmem:[%s1 + $0x108] sm:$0xff]
        %v376 = vld [vmem:[%s1 + $0x110] sm:$0xff]
        %v377 = vld [vmem:[%s1 + $0x118] sm:$0xff]
        %v378 = vld [vmem:[%s1 + $0x120] sm:$0xff]
        %v379 = vld [vmem:[%s1 + $0x128] sm:$0xff]
        %v380 = vld [vmem:[%s1 + $0x130] sm:$0xff]
        %v381 = vld [vmem:[%s1 + $0x138] sm:$0xff]
        %v382 = vld [vmem:[%s1 + $0x140] sm:$0xff]
        %v383 = vld [vmem:[%s1 + $0x148] sm:$0xff]
        %v384 = vld [vmem:[%s1 + $0x150] sm:$0xff]
        %v385 = vld [vmem:[%s1 + $0x158] sm:$0xff]
        %v386 = vld [vmem:[%s1 + $0x160] sm:$0xff]
        %v387 = vld [vmem:[%s1 + $0x168] sm:$0xff]
        %v388 = vld [vmem:[%s1 + $0x170] sm:$0xff]
        %v389 = vld [vmem:[%s1 + $0x178] sm:$0xff]
        %v390 = vld [vmem:[%s1 + $0x180] sm:$0xff]
        %v391 = vld [vmem:[%s1 + $0x188] sm:$0xff]
        %v392 = vld [vmem:[%s1 + $0x190] sm:$0xff]
        %v393 = vld [vmem:[%s1 + $0x198] sm:$0xff]
        %v394 = vld [vmem:[%s1 + $0x1a0] sm:$0xff]
        %v395 = vld [vmem:[%s1 + $0x1a8] sm:$0xff]
        %v396 = vld [vmem:[%s1 + $0x1b0] sm:$0xff]
        %v397 = vld [vmem:[%s1 + $0x1b8] sm:$0xff]
        %v398 = vld [vmem:[%s1 + $0x1c0] sm:$0xff]
        %v399 = vld [vmem:[%s1 + $0x1c8] sm:$0xff]
        %v400 = vld [vmem:[%s1 + $0x1d0] sm:$0xff]
        %v401 = vld [vmem:[%s1 + $0x1d8] sm:$0xff]
        %v402 = vld [vmem:[%s1 + $0x1e0] sm:$0xff]
        %v403 = vld [vmem:[%s1 + $0x1e8] sm:$0xff]
        %v404 = vld [vmem:[%s1 + $0x1f0] sm:$0xff]
        %v405 = vld [vmem:[%s1 + $0x1f8] sm:$0xff]
        %v406 = vld [vmem:[%s1 + $0x200] sm:$0xff]
        %v407 = vld [vmem:[%s1 + $0x208] sm:$0xff]
        %v408 = vld [vmem:[%s1 + $0x210] sm:$0xff]
        %v409 = vld [vmem:[%s1 + $0x218] sm:$0xff]
        %v410 = vld [vmem:[%s1 + $0x220] sm:$0xff]
        %v411 = vld [vmem:[%s1 + $0x228] sm:$0xff]
        %v412 = vld [vmem:[%s1 + $0x230] sm:$0xff]
        %v413 = vld [vmem:[%s1 + $0x238] sm:$0xff]
        %v414 = vld [vmem:[%s1 + $0x240] sm:$0xff]
        %v415 = vld [vmem:[%s1 + $0x248] sm:$0xff]
        %v416 = vld [vmem:[%s1 + $0x250] sm:$0xff]
        %v417 = vld [vmem:[%s1 + $0x258] sm:$0xff]
        %v418 = vld [vmem:[%s1 + $0x260] sm:$0xff]
        %v419 = vld [vmem:[%s1 + $0x268] sm:$0xff]
        %v420 = vld [vmem:[%s1 + $0x270] sm:$0xff]
        %v421 = vld [vmem:[%s1 + $0x278] sm:$0xff]
        %v422 = vld [vmem:[%s1 + $0x280] sm:$0xff]
        %v423 = vld [vmem:[%s1 + $0x288] sm:$0xff]
        %v424 = vld [vmem:[%s1 + $0x290] sm:$0xff]
        %v425 = vld [vmem:[%s1 + $0x298] sm:$0xff]
        %v426 = vld [vmem:[%s1 + $0x2a0] sm:$0xff]
        %v427 = vld [vmem:[%s1 + $0x2a8] sm:$0xff]
        %v428 = vld [vmem:[%s1 + $0x2b0] sm:$0xff]
        %v429 = vld [vmem:[%s1 + $0x2b8] sm:$0xff]
        %v430 = vld [vmem:[%s1 + $0x2c0] sm:$0xff]
        %v431 = vld [vmem:[%s1 + $0x2c8] sm:$0xff]
        %v432 = vld [vmem:[%s1 + $0x2d0] sm:$0xff]
        %v433 = vld [vmem:[%s1 + $0x2d8] sm:$0xff]
        %v434 = vld [vmem:[%s1 + $0x2e0] sm:$0xff]
        %v435 = vld [vmem:[%s1 + $0x2e8] sm:$0xff]
        %v436 = vld [vmem:[%s1 + $0x2f0] sm:$0xff]
        %v437 = vld [vmem:[%s1 + $0x2f8] sm:$0xff]
        %438 = vmatprep.subr.mxu0 %v343
        %439 = vmatpush1.msra.mxu0 %v342
        %440 = vmatprep.subr.mxu0 %v345
        %441 = vmatpush1.msra.mxu0 %v344
        %442 = vmatprep.subr.mxu0 %v347
        %443 = vmatpush1.msra.mxu0 %v346
        %444 = vmatprep.subr.mxu0 %v349
        %445 = vmatpush1.msra.mxu0 %v348
        %446 = vmatprep.subr.mxu0 %v351
        %447 = vmatpush1.msra.mxu0 %v350
        %448 = vmatprep.subr.mxu0 %v353
        %449 = vmatpush1.msra.mxu0 %v352
        %450 = vmatprep.subr.mxu0 %v355
        %451 = vmatpush1.msra.mxu0 %v354
        %452 = vmatprep.subr.mxu0 %v357
        %453 = vmatpush1.msra.mxu0 %v356
        %454 = vmatprep.subr.mxu0 %v359
        %455 = vmatpush1.msra.mxu0 %v358
        %456 = vmatprep.subr.mxu0 %v361
        %457 = vmatpush1.msra.mxu0 %v360
        %458 = vmatprep.subr.mxu0 %v363
        %459 = vmatpush1.msra.mxu0 %v362
        %460 = vmatprep.subr.mxu0 %v365
        %461 = vmatpush1.msra.mxu0 %v364
        %462 = vmatprep.subr.mxu0 %v367
        %463 = vmatpush1.msra.mxu0 %v366
        %464 = vmatprep.subr.mxu0 %v369
        %465 = vmatpush1.msra.mxu0 %v368
        %466 = vmatprep.subr.mxu0 %v371
        %467 = vmatpush1.msra.mxu0 %v370
        %468 = vmatprep.subr.mxu0 %v373
        %469 = vmatpush1.msra.mxu0 %v372
        %470 = vmatprep.subr.mxu0 %v375
        %471 = vmatpush1.msra.mxu0 %v374
        %472 = vmatprep.subr.mxu0 %v377
        %473 = vmatpush1.msra.mxu0 %v376
        %474 = vmatprep.subr.mxu0 %v379
        %475 = vmatpush1.msra.mxu0 %v378
        %476 = vmatprep.subr.mxu0 %v381
        %477 = vmatpush1.msra.mxu0 %v380
        %478 = vmatprep.subr.mxu0 %v383
        %479 = vmatpush1.msra.mxu0 %v382
        %480 = vmatprep.subr.mxu0 %v385
        %481 = vmatpush1.msra.mxu0 %v384
        %482 = vmatprep.subr.mxu0 %v387
        %483 = vmatpush1.msra.mxu0 %v386
        %484 = vmatprep.subr.mxu0 %v389
        %485 = vmatpush1.msra.mxu0 %v388
        %486 = vmatprep.subr.mxu0 %v391
        %487 = vmatpush1.msra.mxu0 %v390
        %488 = vmatprep.subr.mxu0 %v393
        %489 = vmatpush1.msra.mxu0 %v392
        %490 = vmatprep.subr.mxu0 %v395
        %491 = vmatpush1.msra.mxu0 %v394
        %492 = vmatprep.subr.mxu0 %v397
        %493 = vmatpush1.msra.mxu0 %v396
        %494 = vmatprep.subr.mxu0 %v399
        %495 = vmatpush1.msra.mxu0 %v398
        %496 = vmatprep.subr.mxu0 %v401
        %497 = vmatpush1.msra.mxu0 %v400
        %498 = vmatprep.subr.mxu0 %v403
        %499 = vmatpush1.msra.mxu0 %v402
        %500 = vmatprep.subr.mxu0 %v405
        %501 = vmatpush1.msra.mxu0 %v404
        %502 = vmatprep.mubr.f32.mxu0 %v295
        %503 = vmatmul.mubr.f32.gmra.mrb[0].mxu0 %v294
        %v504 = vpop.f32.mrb[0].mxu0
        %v505 = vadd.f32 0.0, %v504
        %v506 = vpop.f32.mrb[0].mxu0
        %v507 = vadd.f32 0.0, %v506
        %508 = vmatprep.mubr.f32.mxu0 %v298
        %509 = vmatmul.mubr.f32.gmra.mrb[0].mxu0 %v297
        %v510 = vpop.f32.mrb[0].mxu0
        %v511 = vadd.f32 0.0, %v510
        %v512 = vpop.f32.mrb[0].mxu0
        %v513 = vadd.f32 0.0, %v512
        %514 = vmatprep.mubr.f32.mxu0 %v301
        %515 = vmatmul.mubr.f32.gmra.mrb[0].mxu0 %v300
        %v516 = vpop.f32.mrb[0].mxu0
        %v517 = vadd.f32 0.0, %v516
        %v518 = vpop.f32.mrb[0].mxu0
        %v519 = vadd.f32 0.0, %v518
        %520 = vmatprep.mubr.f32.mxu0 %v304
        %521 = vmatmul.mubr.f32.gmra.mrb[0].mxu0 %v303
        %v522 = vpop.f32.mrb[0].mxu0
        %v523 = vadd.f32 0.0, %v522
        %v524 = vpop.f32.mrb[0].mxu0
        %v525 = vadd.f32 0.0, %v524
        %526 = vmatprep.mubr.f32.mxu0 %v307
        %527 = vmatmul.mubr.f32.gmra.mrb[0].mxu0 %v306
        %v528 = vpop.f32.mrb[0].mxu0
        %v529 = vadd.f32 0.0, %v528
        %v530 = vpop.f32.mrb[0].mxu0
        %v531 = vadd.f32 0.0, %v530
        %532 = vmatprep.mubr.f32.mxu0 %v310
        %533 = vmatmul.mubr.f32.gmra.mrb[0].mxu0 %v309
        %v534 = vpop.f32.mrb[0].mxu0
        %v535 = vadd.f32 0.0, %v534
        %v536 = vpop.f32.mrb[0].mxu0
        %v537 = vadd.f32 0.0, %v536
        %538 = vmatprep.mubr.f32.mxu0 %v313
        %539 = vmatmul.mubr.f32.gmra.mrb[0].mxu0 %v312
        %v540 = vpop.f32.mrb[0].mxu0
        %v541 = vadd.f32 0.0, %v540
        %v542 = vpop.f32.mrb[0].mxu0
        %v543 = vadd.f32 0.0, %v542
        %544 = vmatprep.mubr.f32.mxu0 %v316
        %545 = vmatmul.mubr.f32.gmra.mrb[0].mxu0 %v315
        %v546 = vpop.f32.mrb[0].mxu0
        %v547 = vadd.f32 0.0, %v546
        %v548 = vpop.f32.mrb[0].mxu0
        %v549 = vadd.f32 0.0, %v548
        %550 = vmatprep.mubr.f32.mxu0 %v319
        %551 = vmatmul.mubr.f32.gmra.mrb[0].mxu0 %v318
        %v552 = vpop.f32.mrb[0].mxu0
        %v553 = vadd.f32 0.0, %v552
        %v554 = vpop.f32.mrb[0].mxu0
        %v555 = vadd.f32 0.0, %v554
        %556 = vmatprep.mubr.f32.mxu0 %v322
        %557 = vmatmul.mubr.f32.gmra.mrb[0].mxu0 %v321
        %v558 = vpop.f32.mrb[0].mxu0
        %v559 = vadd.f32 0.0, %v558
        %v560 = vpop.f32.mrb[0].mxu0
        %v561 = vadd.f32 0.0, %v560
        %562 = vmatprep.mubr.f32.mxu0 %v325
        %563 = vmatmul.mubr.f32.gmra.mrb[0].mxu0 %v324
        %v564 = vpop.f32.mrb[0].mxu0
        %v565 = vadd.f32 0.0, %v564
        %v566 = vpop.f32.mrb[0].mxu0
        %v567 = vadd.f32 0.0, %v566
        %568 = vmatprep.mubr.f32.mxu0 %v328
        %569 = vmatmul.mubr.f32.gmra.mrb[0].mxu0 %v327
        %v570 = vpop.f32.mrb[0].mxu0
        %v571 = vadd.f32 0.0, %v570
        %v572 = vpop.f32.mrb[0].mxu0
        %v573 = vadd.f32 0.0, %v572
        %574 = vmatprep.mubr.f32.mxu0 %v331
        %575 = vmatmul.mubr.f32.gmra.mrb[0].mxu0 %v330
        %v576 = vpop.f32.mrb[0].mxu0
        %v577 = vadd.f32 0.0, %v576
        %v578 = vpop.f32.mrb[0].mxu0
        %v579 = vadd.f32 0.0, %v578
        %580 = vmatprep.mubr.f32.mxu0 %v334
        %581 = vmatmul.mubr.f32.gmra.mrb[0].mxu0 %v333
        %v582 = vpop.f32.mrb[0].mxu0
        %v583 = vadd.f32 0.0, %v582
        %v584 = vpop.f32.mrb[0].mxu0
        %v585 = vadd.f32 0.0, %v584
        %586 = vmatprep.mubr.f32.mxu0 %v337
        %587 = vmatmul.mubr.f32.gmra.mrb[0].mxu0 %v336
        %v588 = vpop.f32.mrb[0].mxu0
        %v589 = vadd.f32 0.0, %v588
        %v590 = vpop.f32.mrb[0].mxu0
        %v591 = vadd.f32 0.0, %v590
        %592 = vmatprep.mubr.f32.mxu0 %v340
        %593 = vmatmul.mubr.f32.gmra.mrb[0].mxu0 %v339
        %v594 = vpop.f32.mrb[0].mxu0
        %v595 = vadd.f32 0.0, %v594
        %v596 = vpop.f32.mrb[0].mxu0
        %v597 = vadd.f32 0.0, %v596
        %598 = vdwg.mxu0
        %599 = vmatprep.subr.mxu0 %v407
        %600 = vmatpush1.msra.mxu0 %v406
        %601 = vmatprep.subr.mxu0 %v409
        %602 = vmatpush1.msra.mxu0 %v408
        %603 = vmatprep.subr.mxu0 %v411
        %604 = vmatpush1.msra.mxu0 %v410
        %605 = vmatprep.subr.mxu0 %v413
        %606 = vmatpush1.msra.mxu0 %v412
        %607 = vmatprep.subr.mxu0 %v415
        %608 = vmatpush1.msra.mxu0 %v414
        %609 = vmatprep.subr.mxu0 %v417
        %610 = vmatpush1.msra.mxu0 %v416
        %611 = vmatprep.subr.mxu0 %v419
        %612 = vmatpush1.msra.mxu0 %v418
        %613 = vmatprep.subr.mxu0 %v421
        %614 = vmatpush1.msra.mxu0 %v420
        %615 = vmatprep.subr.mxu0 %v423
        %616 = vmatpush1.msra.mxu0 %v422
        %617 = vmatprep.subr.mxu0 %v425
        %618 = vmatpush1.msra.mxu0 %v424
        %619 = vmatprep.subr.mxu0 %v427
        %620 = vmatpush1.msra.mxu0 %v426
        %621 = vmatprep.subr.mxu0 %v429
        %622 = vmatpush1.msra.mxu0 %v428
        %623 = vmatprep.subr.mxu0 %v431
        %624 = vmatpush1.msra.mxu0 %v430
        %625 = vmatprep.subr.mxu0 %v433
        %626 = vmatpush1.msra.mxu0 %v432
        %627 = vmatprep.subr.mxu0 %v435
        %628 = vmatpush1.msra.mxu0 %v434
        %629 = vmatprep.subr.mxu0 %v437
        %630 = vmatpush1.msra.mxu0 %v436
        %631 = vmatprep.subr.mxu0 0.0
        %632 = vmatpush1.msra.mxu0 0.0
        %633 = vmatprep.subr.mxu0 0.0
        %634 = vmatpush1.msra.mxu0 0.0
        %635 = vmatprep.subr.mxu0 0.0
        %636 = vmatpush1.msra.mxu0 0.0
        %637 = vmatprep.subr.mxu0 0.0
        %638 = vmatpush1.msra.mxu0 0.0
        %639 = vmatprep.subr.mxu0 0.0
        %640 = vmatpush1.msra.mxu0 0.0
        %641 = vmatprep.subr.mxu0 0.0
        %642 = vmatpush1.msra.mxu0 0.0
        %643 = vmatprep.subr.mxu0 0.0
        %644 = vmatpush1.msra.mxu0 0.0
        %645 = vmatprep.subr.mxu0 0.0
        %646 = vmatpush1.msra.mxu0 0.0
        %647 = vmatprep.subr.mxu0 0.0
        %648 = vmatpush1.msra.mxu0 0.0
        %649 = vmatprep.subr.mxu0 0.0
        %650 = vmatpush1.msra.mxu0 0.0
        %651 = vmatprep.subr.mxu0 0.0
        %652 = vmatpush1.msra.mxu0 0.0
        %653 = vmatprep.subr.mxu0 0.0
        %654 = vmatpush1.msra.mxu0 0.0
        %655 = vmatprep.subr.mxu0 0.0
        %656 = vmatpush1.msra.mxu0 0.0
        %657 = vmatprep.subr.mxu0 0.0
        %658 = vmatpush1.msra.mxu0 0.0
        %659 = vmatprep.subr.mxu0 0.0
        %660 = vmatpush1.msra.mxu0 0.0
        %661 = vmatprep.subr.mxu0 0.0
        %662 = vmatpush1.msra.mxu0 0.0
        %663 = vmatprep.mubr.f32.mxu0 0.0
        %664 = vmatmul.mubr.f32.gmra.mrb[0].mxu0 %v296
        %v665 = vpop.f32.mrb[0].mxu0
        %v666 = vadd.f32 %v505, %v665
        %v667 = vpop.f32.mrb[0].mxu0
        %v668 = vadd.f32 %v507, %v667
        %669 = vmatprep.mubr.f32.mxu0 0.0
        %670 = vmatmul.mubr.f32.gmra.mrb[0].mxu0 %v299
        %v671 = vpop.f32.mrb[0].mxu0
        %v672 = vadd.f32 %v511, %v671
        %v673 = vpop.f32.mrb[0].mxu0
        %v674 = vadd.f32 %v513, %v673
        %675 = vmatprep.mubr.f32.mxu0 0.0
        %676 = vmatmul.mubr.f32.gmra.mrb[0].mxu0 %v302
        %v677 = vpop.f32.mrb[0].mxu0
        %v678 = vadd.f32 %v517, %v677
        %v679 = vpop.f32.mrb[0].mxu0
        %v680 = vadd.f32 %v519, %v679
        %681 = vmatprep.mubr.f32.mxu0 0.0
        %682 = vmatmul.mubr.f32.gmra.mrb[0].mxu0 %v305
        %v683 = vpop.f32.mrb[0].mxu0
        %v684 = vadd.f32 %v523, %v683
        %v685 = vpop.f32.mrb[0].mxu0
        %v686 = vadd.f32 %v525, %v685
        %687 = vmatprep.mubr.f32.mxu0 0.0
        %688 = vmatmul.mubr.f32.gmra.mrb[0].mxu0 %v308
        %v689 = vpop.f32.mrb[0].mxu0
        %v690 = vadd.f32 %v529, %v689
        %v691 = vpop.f32.mrb[0].mxu0
        %v692 = vadd.f32 %v531, %v691
        %693 = vmatprep.mubr.f32.mxu0 0.0
        %694 = vmatmul.mubr.f32.gmra.mrb[0].mxu0 %v311
        %v695 = vpop.f32.mrb[0].mxu0
        %v696 = vadd.f32 %v535, %v695
        %v697 = vpop.f32.mrb[0].mxu0
        %v698 = vadd.f32 %v537, %v697
        %699 = vmatprep.mubr.f32.mxu0 0.0
        %700 = vmatmul.mubr.f32.gmra.mrb[0].mxu0 %v314
        %v701 = vpop.f32.mrb[0].mxu0
        %v702 = vadd.f32 %v541, %v701
        %v703 = vpop.f32.mrb[0].mxu0
        %v704 = vadd.f32 %v543, %v703
        %705 = vmatprep.mubr.f32.mxu0 0.0
        %706 = vmatmul.mubr.f32.gmra.mrb[0].mxu0 %v317
        %v707 = vpop.f32.mrb[0].mxu0
        %v708 = vadd.f32 %v547, %v707
        %v709 = vpop.f32.mrb[0].mxu0
        %v710 = vadd.f32 %v549, %v709
        %711 = vmatprep.mubr.f32.mxu0 0.0
        %712 = vmatmul.mubr.f32.gmra.mrb[0].mxu0 %v320
        %v713 = vpop.f32.mrb[0].mxu0
        %v714 = vadd.f32 %v553, %v713
        %v715 = vpop.f32.mrb[0].mxu0
        %v716 = vadd.f32 %v555, %v715
        %717 = vmatprep.mubr.f32.mxu0 0.0
        %718 = vmatmul.mubr.f32.gmra.mrb[0].mxu0 %v323
        %v719 = vpop.f32.mrb[0].mxu0
        %v720 = vadd.f32 %v559, %v719
        %v721 = vpop.f32.mrb[0].mxu0
        %v722 = vadd.f32 %v561, %v721
        %723 = vmatprep.mubr.f32.mxu0 0.0
        %724 = vmatmul.mubr.f32.gmra.mrb[0].mxu0 %v326
        %v725 = vpop.f32.mrb[0].mxu0
        %v726 = vadd.f32 %v565, %v725
        %v727 = vpop.f32.mrb[0].mxu0
        %v728 = vadd.f32 %v567, %v727
        %729 = vmatprep.mubr.f32.mxu0 0.0
        %730 = vmatmul.mubr.f32.gmra.mrb[0].mxu0 %v329
        %v731 = vpop.f32.mrb[0].mxu0
        %v732 = vadd.f32 %v571, %v731
        %v733 = vpop.f32.mrb[0].mxu0
        %v734 = vadd.f32 %v573, %v733
        %735 = vmatprep.mubr.f32.mxu0 0.0
        %736 = vmatmul.mubr.f32.gmra.mrb[0].mxu0 %v332
        %v737 = vpop.f32.mrb[0].mxu0
        %v738 = vadd.f32 %v577, %v737
        %v739 = vpop.f32.mrb[0].mxu0
        %v740 = vadd.f32 %v579, %v739
        %741 = vmatprep.mubr.f32.mxu0 0.0
        %742 = vmatmul.mubr.f32.gmra.mrb[0].mxu0 %v335
        %v743 = vpop.f32.mrb[0].mxu0
        %v744 = vadd.f32 %v583, %v743
        %v745 = vpop.f32.mrb[0].mxu0
        %v746 = vadd.f32 %v585, %v745
        %747 = vmatprep.mubr.f32.mxu0 0.0
        %748 = vmatmul.mubr.f32.gmra.mrb[0].mxu0 %v338
        %v749 = vpop.f32.mrb[0].mxu0
        %v750 = vadd.f32 %v589, %v749
        %v751 = vpop.f32.mrb[0].mxu0
        %v752 = vadd.f32 %v591, %v751
        %753 = vmatprep.mubr.f32.mxu0 0.0
        %754 = vmatmul.mubr.f32.gmra.mrb[0].mxu0 %v341
        %v755 = vpop.f32.mrb[0].mxu0
        %v756 = vadd.f32 %v595, %v755
        %v757 = vpop.f32.mrb[0].mxu0
        %v758 = vadd.f32 %v597, %v757
        %759 = vdwg.mxu0
        %v760 = vpack.c.bf16 %v672, %v666
        %v761 = vpack.c.bf16 %v684, %v678
        %v762 = vpack.c.bf16 %v696, %v690
        %v763 = vpack.c.bf16 %v708, %v702
        %v764 = vpack.c.bf16 %v720, %v714
        %v765 = vpack.c.bf16 %v732, %v726
        %v766 = vpack.c.bf16 %v744, %v738
        %v767 = vpack.c.bf16 %v756, %v750
        %v776 = vunpack.c.l.b16 %v760
        %v777 = vunpack.c.h.b16 %v760
        %v778 = vunpack.c.l.b16 %v761
        %v779 = vunpack.c.h.b16 %v761
        %v780 = vunpack.c.l.b16 %v762
        %v781 = vunpack.c.h.b16 %v762
        %v782 = vunpack.c.l.b16 %v763
        %v783 = vunpack.c.h.b16 %v763
        %v784 = vunpack.c.l.b16 %v764
        %v785 = vunpack.c.h.b16 %v764
        %v786 = vunpack.c.l.b16 %v765
        %v787 = vunpack.c.h.b16 %v765
        %v788 = vunpack.c.l.b16 %v766
        %v789 = vunpack.c.h.b16 %v766
        %v790 = vunpack.c.l.b16 %v767
        %v791 = vunpack.c.h.b16 %v767
        %v792 = vpack.c.b16 %v776, %v776
        %v793 = vpack.c.b16 %v777, %v777
        %v794 = vpack.c.b16 %v778, %v778
        %v795 = vpack.c.b16 %v779, %v779
        %v796 = vpack.c.b16 %v780, %v780
        %v797 = vpack.c.b16 %v781, %v781
        %v798 = vpack.c.b16 %v782, %v782
        %v799 = vpack.c.b16 %v783, %v783
        %v800 = vpack.c.b16 %v784, %v784
        %v801 = vpack.c.b16 %v785, %v785
        %v802 = vpack.c.b16 %v786, %v786
        %v803 = vpack.c.b16 %v787, %v787
        %v804 = vpack.c.b16 %v788, %v788
        %v805 = vpack.c.b16 %v789, %v789
        %v806 = vpack.c.b16 %v790, %v790
        %v807 = vpack.c.b16 %v791, %v791
        %vm824 = vcmask 519168
        %825 = vst.msk [vmem:[%s272] sm:$0xf] %vm824, %v792
        %826 = vst.msk [vmem:[%s272 + $0x4] sm:$0xf] %vm824, %v793
        %827 = vst.msk [vmem:[%s272 + $0x8] sm:$0xf] %vm824, %v794
        %828 = vst.msk [vmem:[%s272 + $0xc] sm:$0xf] %vm824, %v795
        %829 = vst.msk [vmem:[%s272 + $0x10] sm:$0xf] %vm824, %v796
        %830 = vst.msk [vmem:[%s272 + $0x14] sm:$0xf] %vm824, %v797
        %831 = vst.msk [vmem:[%s272 + $0x18] sm:$0xf] %vm824, %v798
        %832 = vst.msk [vmem:[%s272 + $0x1c] sm:$0xf] %vm824, %v799
        %833 = vst.msk [vmem:[%s272 + $0x20] sm:$0xf] %vm824, %v800
        %834 = vst.msk [vmem:[%s272 + $0x24] sm:$0xf] %vm824, %v801
        %835 = vst.msk [vmem:[%s272 + $0x28] sm:$0xf] %vm824, %v802
        %836 = vst.msk [vmem:[%s272 + $0x2c] sm:$0xf] %vm824, %v803
        %837 = vst.msk [vmem:[%s272 + $0x30] sm:$0xf] %vm824, %v804
        %838 = vst.msk [vmem:[%s272 + $0x34] sm:$0xf] %vm824, %v805
        %839 = vst.msk [vmem:[%s272 + $0x38] sm:$0xf] %vm824, %v806
        %840 = vst.msk [vmem:[%s272 + $0x3c] sm:$0xf] %vm824, %v807
        %841 = vrot.lane.b32.xlu0 %v792, 64
        %v842 = vpop.permute.xlu0 %841
        %843 = vrot.lane.b32.xlu0 %v793, 64
        %v844 = vpop.permute.xlu0 %843
        %845 = vrot.lane.b32.xlu0 %v794, 64
        %v846 = vpop.permute.xlu0 %845
        %847 = vrot.lane.b32.xlu0 %v795, 64
        %v848 = vpop.permute.xlu0 %847
        %849 = vrot.lane.b32.xlu0 %v796, 64
        %v850 = vpop.permute.xlu0 %849
        %851 = vrot.lane.b32.xlu0 %v797, 64
        %v852 = vpop.permute.xlu0 %851
        %853 = vrot.lane.b32.xlu0 %v798, 64
        %v854 = vpop.permute.xlu0 %853
        %855 = vrot.lane.b32.xlu0 %v799, 64
        %v856 = vpop.permute.xlu0 %855
        %857 = vrot.lane.b32.xlu0 %v800, 64
        %v858 = vpop.permute.xlu0 %857
        %859 = vrot.lane.b32.xlu0 %v801, 64
        %v860 = vpop.permute.xlu0 %859
        %861 = vrot.lane.b32.xlu0 %v802, 64
        %v862 = vpop.permute.xlu0 %861
        %863 = vrot.lane.b32.xlu0 %v803, 64
        %v864 = vpop.permute.xlu0 %863
        %865 = vrot.lane.b32.xlu0 %v804, 64
        %v866 = vpop.permute.xlu0 %865
        %867 = vrot.lane.b32.xlu0 %v805, 64
        %v868 = vpop.permute.xlu0 %867
        %869 = vrot.lane.b32.xlu0 %v806, 64
        %v870 = vpop.permute.xlu0 %869
        %871 = vrot.lane.b32.xlu0 %v807, 64
        %v872 = vpop.permute.xlu0 %871
        %889 = vst.msk [vmem:[%s282] sm:$0xf] %vm824, %v842
        %890 = vst.msk [vmem:[%s282 + $0x4] sm:$0xf] %vm824, %v844
        %891 = vst.msk [vmem:[%s282 + $0x8] sm:$0xf] %vm824, %v846
        %892 = vst.msk [vmem:[%s282 + $0xc] sm:$0xf] %vm824, %v848
        %893 = vst.msk [vmem:[%s282 + $0x10] sm:$0xf] %vm824, %v850
        %894 = vst.msk [vmem:[%s282 + $0x14] sm:$0xf] %vm824, %v852
        %895 = vst.msk [vmem:[%s282 + $0x18] sm:$0xf] %vm824, %v854
        %896 = vst.msk [vmem:[%s282 + $0x1c] sm:$0xf] %vm824, %v856
        %897 = vst.msk [vmem:[%s282 + $0x20] sm:$0xf] %vm824, %v858
        %898 = vst.msk [vmem:[%s282 + $0x24] sm:$0xf] %vm824, %v860
        %899 = vst.msk [vmem:[%s282 + $0x28] sm:$0xf] %vm824, %v862
        %900 = vst.msk [vmem:[%s282 + $0x2c] sm:$0xf] %vm824, %v864
        %901 = vst.msk [vmem:[%s282 + $0x30] sm:$0xf] %vm824, %v866
        %902 = vst.msk [vmem:[%s282 + $0x34] sm:$0xf] %vm824, %v868
        %903 = vst.msk [vmem:[%s282 + $0x38] sm:$0xf] %vm824, %v870
        %904 = vst.msk [vmem:[%s282 + $0x3c] sm:$0xf] %vm824, %v872
        %v905 = vpack.c.bf16 %v674, %v668
        %v906 = vpack.c.bf16 %v686, %v680
        %v907 = vpack.c.bf16 %v698, %v692
        %v908 = vpack.c.bf16 %v710, %v704
        %v909 = vpack.c.bf16 %v722, %v716
        %v910 = vpack.c.bf16 %v734, %v728
        %v911 = vpack.c.bf16 %v746, %v740
        %v912 = vpack.c.bf16 %v758, %v752
        %v921 = vunpack.c.l.b16 %v905
        %v922 = vunpack.c.h.b16 %v905
        %v923 = vunpack.c.l.b16 %v906
        %v924 = vunpack.c.h.b16 %v906
        %v925 = vunpack.c.l.b16 %v907
        %v926 = vunpack.c.h.b16 %v907
        %v927 = vunpack.c.l.b16 %v908
        %v928 = vunpack.c.h.b16 %v908
        %v929 = vunpack.c.l.b16 %v909
        %v930 = vunpack.c.h.b16 %v909
        %v931 = vunpack.c.l.b16 %v910
        %v932 = vunpack.c.h.b16 %v910
        %v933 = vunpack.c.l.b16 %v911
        %v934 = vunpack.c.h.b16 %v911
        %v935 = vunpack.c.l.b16 %v912
        %v936 = vunpack.c.h.b16 %v912
        %v937 = vpack.c.b16 %v921, %v921
        %v938 = vpack.c.b16 %v922, %v922
        %v939 = vpack.c.b16 %v923, %v923
        %v940 = vpack.c.b16 %v924, %v924
        %v941 = vpack.c.b16 %v925, %v925
        %v942 = vpack.c.b16 %v926, %v926
        %v943 = vpack.c.b16 %v927, %v927
        %v944 = vpack.c.b16 %v928, %v928
        %v945 = vpack.c.b16 %v929, %v929
        %v946 = vpack.c.b16 %v930, %v930
        %v947 = vpack.c.b16 %v931, %v931
        %v948 = vpack.c.b16 %v932, %v932
        %v949 = vpack.c.b16 %v933, %v933
        %v950 = vpack.c.b16 %v934, %v934
        %v951 = vpack.c.b16 %v935, %v935
        %v952 = vpack.c.b16 %v936, %v936
        %969 = vst.msk [vmem:[%s292] sm:$0xf] %vm824, %v937
        %970 = vst.msk [vmem:[%s292 + $0x4] sm:$0xf] %vm824, %v938
        %971 = vst.msk [vmem:[%s292 + $0x8] sm:$0xf] %vm824, %v939
        %972 = vst.msk [vmem:[%s292 + $0xc] sm:$0xf] %vm824, %v940
        %973 = vst.msk [vmem:[%s292 + $0x10] sm:$0xf] %vm824, %v941
        %974 = vst.msk [vmem:[%s292 + $0x14] sm:$0xf] %vm824, %v942
        %975 = vst.msk [vmem:[%s292 + $0x18] sm:$0xf] %vm824, %v943
        %976 = vst.msk [vmem:[%s292 + $0x1c] sm:$0xf] %vm824, %v944
        %977 = vst.msk [vmem:[%s292 + $0x20] sm:$0xf] %vm824, %v945
        %978 = vst.msk [vmem:[%s292 + $0x24] sm:$0xf] %vm824, %v946
        %979 = vst.msk [vmem:[%s292 + $0x28] sm:$0xf] %vm824, %v947
        %980 = vst.msk [vmem:[%s292 + $0x2c] sm:$0xf] %vm824, %v948
        %981 = vst.msk [vmem:[%s292 + $0x30] sm:$0xf] %vm824, %v949
        %982 = vst.msk [vmem:[%s292 + $0x34] sm:$0xf] %vm824, %v950
        %983 = vst.msk [vmem:[%s292 + $0x38] sm:$0xf] %vm824, %v951
        %984 = vst.msk [vmem:[%s292 + $0x3c] sm:$0xf] %vm824, %v952
        %s985 = smul.u32 16, %s24
        %p986 = scmp.lt.s32.totalorder %s23, 1
        %s987 = scalar_select %p986, %s23, 1
        %p988 = scmp.lt.s32.totalorder %s985, 31
        %s989 = scalar_select %p988, %s985, 31
        %s990 = smul.addr %s987, 32
        %s991 = sadd.s32 %s989, %s990
        %s992 = smul.addr %s991, 4
        %s993 = scalar_lea.vmem %s2, %s992
        %s994 = smul.u32 16, %s24
        %p995 = scmp.lt.s32.totalorder %s23, 1
        %s996 = scalar_select %p995, %s23, 1
        %p997 = scmp.lt.s32.totalorder %s994, 31
        %s998 = scalar_select %p997, %s994, 31
        %s999 = smul.addr %s996, 32
        %s1000 = sadd.s32 %s998, %s999
        %s1001 = smul.addr %s1000, 4
        %s1002 = scalar_lea.vmem %s3, %s1001
        %s1003 = smul.u32 16, %s24
        %p1004 = scmp.lt.s32.totalorder %s23, 1
        %s1005 = scalar_select %p1004, %s23, 1
        %p1006 = scmp.lt.s32.totalorder %s1003, 31
        %s1007 = scalar_select %p1006, %s1003, 31
        %s1008 = smul.addr %s1005, 32
        %s1009 = sadd.s32 %s1007, %s1008
        %s1010 = smul.addr %s1009, 4
        %s1011 = scalar_lea.vmem %s4, %s1010
        // Predicated region
        $region33: #{tpu_custom_call.1} parent=27 // pred_check
          %p1012 = pneg %p100
        $region34: #{tpu_custom_call.1} parent=27 // pred_check_branch
          %1014 = sbr.rel (%p1012) target = $region36
        $region35: #{tpu_custom_call.1} parent=27 // pred_region
          %s1015 = smul.u32 16, %s24
        $region36: #{tpu_custom_call.1} parent=27 // pred_fallthru
          _
        // Predicated region
        $region37: #{tpu_custom_call.1} parent=27 // pred_check
          %p1016 = pneg %p128
        $region38: #{tpu_custom_call.1} parent=27 // pred_check_branch
          %1018 = sbr.rel (%p1016) target = $region40
        $region39: #{tpu_custom_call.1} parent=27 // pred_region
          %s1019 = smul.u32 16, %s24
        $region40: #{tpu_custom_call.1} parent=27 // pred_fallthru
          _
        // Predicated region
        $region41: #{tpu_custom_call.1} parent=27 // pred_check
          %p1020 = pneg %p156
        $region42: #{tpu_custom_call.1} parent=27 // pred_check_branch
          %1022 = sbr.rel (%p1020) target = $region44
        $region43: #{tpu_custom_call.1} parent=27 // pred_region
          %s1023 = smul.u32 16, %s24
        $region44: #{tpu_custom_call.1} parent=27 // pred_fallthru
          _
      $region28: #{tpu_custom_call.1} parent=5 // pred_fallthru
        _
      %p1024 = scmp.le.s32.totalorder 2, %s14
      // Predicated region
      $region45: #{tpu_custom_call.1} parent=5 // pred_check
        %p1025 = pneg %p1024
      $region46: #{tpu_custom_call.1} parent=5 // pred_check_branch
        %1027 = sbr.rel (%p1025) target = $region48
      $region47: #{tpu_custom_call.1} parent=5 // pred_region
        %s1028 = ssub.s32 %s14, 2
        // Predicated region
        $region49: #{tpu_custom_call.1} parent=47 // pred_check
          %p1029 = pneg %p106
        $region50: #{tpu_custom_call.1} parent=47 // pred_check_branch
          %1031 = sbr.rel (%p1029) target = $region52
        $region51: #{tpu_custom_call.1} parent=47 // pred_region
          %s1032 = smul.u32 16, %s26
          %p1033 = scmp.lt.s32.totalorder %s25, 1
          %s1034 = scalar_select %p1033, %s25, 1
          %p1035 = scmp.lt.s32.totalorder %s1032, 31
          %s1036 = scalar_select %p1035, %s1032, 31
          %s1037 = smul.addr %s1034, 32
          %s1038 = sadd.s32 %s1036, %s1037
          %s1039 = smul.addr %s1038, 4
          %s1040 = scalar_lea.vmem %s2, %s1039
        $region52: #{tpu_custom_call.1} parent=47 // pred_fallthru
          _
        // Predicated region
        $region53: #{tpu_custom_call.1} parent=47 // pred_check
          %p1041 = pneg %p134
        $region54: #{tpu_custom_call.1} parent=47 // pred_check_branch
          %1043 = sbr.rel (%p1041) target = $region56
        $region55: #{tpu_custom_call.1} parent=47 // pred_region
          %s1044 = smul.u32 16, %s26
          %p1045 = scmp.lt.s32.totalorder %s25, 1
          %s1046 = scalar_select %p1045, %s25, 1
          %p1047 = scmp.lt.s32.totalorder %s1044, 31
          %s1048 = scalar_select %p1047, %s1044, 31
          %s1049 = smul.addr %s1046, 32
          %s1050 = sadd.s32 %s1048, %s1049
          %s1051 = smul.addr %s1050, 4
          %s1052 = scalar_lea.vmem %s3, %s1051
        $region56: #{tpu_custom_call.1} parent=47 // pred_fallthru
          _
        // Predicated region
        $region57: #{tpu_custom_call.1} parent=47 // pred_check
          %p1053 = pneg %p162
        $region58: #{tpu_custom_call.1} parent=47 // pred_check_branch
          %1055 = sbr.rel (%p1053) target = $region60
        $region59: #{tpu_custom_call.1} parent=47 // pred_region
          %s1056 = smul.u32 16, %s26
          %p1057 = scmp.lt.s32.totalorder %s25, 1
          %s1058 = scalar_select %p1057, %s25, 1
          %p1059 = scmp.lt.s32.totalorder %s1056, 31
          %s1060 = scalar_select %p1059, %s1056, 31
          %s1061 = smul.addr %s1058, 32
          %s1062 = sadd.s32 %s1060, %s1061
          %s1063 = smul.addr %s1062, 4
          %s1064 = scalar_lea.vmem %s4, %s1063
        $region60: #{tpu_custom_call.1} parent=47 // pred_fallthru
          _
      $region48: #{tpu_custom_call.1} parent=5 // pred_fallthru
        _
    $region6: #{tpu_custom_call.1} parent=1 // loop_footer
      %s18 = sadd.s32 1, %s14
    $region7: #{tpu_custom_call.1} parent=1 // loop_footer_branch
      %13 = sbr.rel target = $region3
    $region8: #{tpu_custom_call.1} parent=1 // loop_exit
      _
    %1065 = vsyncpa [#allocation3], 1
    %s1066 = scalar_lea.sflag [#allocation3], 1
    %1067 = vsyncpa %s1066, 1

</llo_original>
